<compile_context>
chip_gen: v7x
topology: tpu7x:2x2x1
jax: 0.10.0
libtpu: 0.0.40
codegen_flags: <defaults>
</compile_context>

<pallas_src>
import jax
import jax.numpy as jnp
from jax.experimental import pallas as pl
from jax.experimental.pallas import tpu as pltpu
from functools import partial

SUBLANE = 8
MAX_BATCH_TILE = 2048          # upper bound on rows per grid step
SPLIT_THRESHOLD = 512          # batches >= this always get >= 2 grid steps (v7x megacore)
VMEM_BUDGET_BYTES = 32 << 20   # working-set target; fits every generation with headroom


def _round_up(x, m):
    return ((x + m - 1) // m) * m


def _choose_batch_tiling(batch, max_tile, split_threshold=SPLIT_THRESHOLD):
    """Return (batch_padded, batch_tile).

    Small batches: one full-array tile, zero padding.
    Large batches: n >= 2 near-equal 8-aligned tiles (feeds both v7x TCs);
    padding is < 8 rows per tile.
    """
    if batch <= max_tile and batch < split_threshold:
        return batch, batch                      # full-array block: no (8,128) issue, no pad
    n = max(2, -(-batch // max_tile))
    tile = _round_up(-(-batch // n), SUBLANE)
    return n * tile, tile


def td3_actor_kernel(x_ref, w1_ref, b1_ref, w2_ref, b2_ref,
                     w3_ref, b3_ref, wmu_ref, bmu_ref, o_ref, *, max_action):
    # Activations may arrive as bf16; upcast in-register so every matmul is
    # f32 x f32 with f32 accumulation and all elementwise stays f32.
    x = x_ref[...].astype(jnp.float32)
    h = jnp.maximum(
        jnp.dot(x, w1_ref[...], preferred_element_type=jnp.float32) + b1_ref[...], 0.0)
    h = jnp.maximum(
        jnp.dot(h, w2_ref[...], preferred_element_type=jnp.float32) + b2_ref[...], 0.0)
    h = jnp.maximum(
        jnp.dot(h, w3_ref[...], preferred_element_type=jnp.float32) + b3_ref[...], 0.0)
    mu = jnp.dot(h, wmu_ref[...], preferred_element_type=jnp.float32) + bmu_ref[...]
    o_ref[...] = ((jnp.tanh(mu) + max_action) * 0.5).astype(o_ref.dtype)


def td3_actor_forward(x, params, max_action, *, batch_tile=None,
                      activation_dtype=jnp.bfloat16):
    """x: [batch, state_dim]. params: dict of [in,out] weights & [1,out] biases (f32)."""
    batch, state_dim = x.shape
    fc1 = params["w1"].shape[1]
    fc2 = params["w2"].shape[1]
    fc3 = params["w3"].shape[1]
    action_dim = params["wmu"].shape[1]

    # Halve activation DMA (under jit this cast fuses with the upstream producer).
    if activation_dtype is not None and x.dtype != activation_dtype:
        x = x.astype(activation_dtype)

    weights = (params["w1"], params["b1"], params["w2"], params["b2"],
               params["w3"], params["b3"], params["wmu"], params["bmu"])
    param_bytes = sum(int(a.size) * a.dtype.itemsize for a in weights)

    # --- Per-row VMEM footprint -> largest tile that fits the budget. ---
    per_row = (2 * state_dim * x.dtype.itemsize          # double-buffered input tile
               + 2 * action_dim * 4                      # double-buffered output tile (f32)
               + 4 * (fc1 + fc2 + fc3 + action_dim))     # f32 layer activations
    fit = (VMEM_BUDGET_BYTES - 2 * param_bytes) // per_row
    max_tile = min(MAX_BATCH_TILE, max(SUBLANE, (fit // SUBLANE) * SUBLANE))

    if batch_tile is not None:
        tile = batch_tile
        batch_padded = _round_up(batch, tile)
    else:
        batch_padded, tile = _choose_batch_tiling(batch, max_tile)

    if batch_padded != batch:
        x = jnp.pad(x, ((0, batch_padded - batch), (0, 0)))
    grid = (batch_padded // tile,)

    args = (x,) + weights
    x_spec = pl.BlockSpec((tile, state_dim), lambda i: (i, 0))
    out_spec = pl.BlockSpec((tile, action_dim), lambda i: (i, 0))
    const_spec = lambda a: pl.BlockSpec(a.shape, lambda i: (0, 0))   # VMEM-resident params
    in_specs = [x_spec] + [const_spec(a) for a in weights]

    # --- Advisory cost estimate (de-padded output). ---
    flops = 2 * batch_padded * (state_dim * fc1 + fc1 * fc2 + fc2 * fc3 + fc3 * action_dim)
    bytes_accessed = (int(x.size) * x.dtype.itemsize + param_bytes
                      + batch_padded * action_dim * 4)
    cost = pl.CostEstimate(flops=flops,
                           transcendentals=batch_padded * action_dim,
                           bytes_accessed=bytes_accessed)

    # --- VMEM limit from the actual footprint (tile already sized to fit). ---
    vmem_est = 2 * param_bytes + per_row * tile
    vmem_limit = max(int(1.5 * vmem_est), 4 << 20)

    out = pl.pallas_call(
        partial(td3_actor_kernel, max_action=float(max_action)),
        out_shape=jax.ShapeDtypeStruct((batch_padded, action_dim), jnp.float32),
        grid=grid,
        in_specs=in_specs,
        out_specs=out_spec,
        compiler_params=pltpu.CompilerParams(
            dimension_semantics=("parallel",),
            vmem_limit_bytes=vmem_limit),
        cost_estimate=cost,
    )(*args)

    return out[:batch] if batch_padded != batch else out


def init_params(key, state_dim, fc1, fc2, fc3, action_dim):
    """Deterministic PyTorch-style uniform(-1/sqrt(fan_in), 1/sqrt(fan_in)) init."""
    def linear(key, fan_in, fan_out):
        kw, kb = jax.random.split(key)
        bound = 1.0 / jnp.sqrt(fan_in)
        # stored already transposed: [in, out]
        w = jax.random.uniform(kw, (fan_in, fan_out), jnp.float32, -bound, bound)
        b = jax.random.uniform(kb, (1, fan_out), jnp.float32, -bound, bound)
        return w, b

    k1, k2, k3, k4 = jax.random.split(key, 4)
    w1, b1 = linear(k1, state_dim, fc1)
    w2, b2 = linear(k2, fc1, fc2)
    w3, b3 = linear(k3, fc2, fc3)
    wmu, bmu = linear(k4, fc3, action_dim)
    return {"w1": w1, "b1": b1, "w2": w2, "b2": b2,
            "w3": w3, "b3": b3, "wmu": wmu, "bmu": bmu}


def reference_forward(x, params, max_action):
    h = jnp.maximum(x @ params["w1"] + params["b1"], 0.0)
    h = jnp.maximum(h @ params["w2"] + params["b2"], 0.0)
    h = jnp.maximum(h @ params["w3"] + params["b3"], 0.0)
    return (jnp.tanh(h @ params["wmu"] + params["bmu"]) + max_action) / 2


if __name__ == "__main__":
    # Small, module-consistent shapes.
    batch, state_dim = 2, 16
    fc1, fc2, fc3 = 32, 32, 32
    action_dim = 8
    max_action = 1.0

    key = jax.random.PRNGKey(0)
    kx, kp = jax.random.split(key)
    x = jax.random.normal(kx, (batch, state_dim), jnp.float32)
    params = init_params(kp, state_dim, fc1, fc2, fc3, action_dim)

    # 1) Bit-exact path (f32 activations end-to-end) vs f32 reference.
    out_f32 = jax.block_until_ready(
        td3_actor_forward(x, params, max_action, activation_dtype=None))
    ref = reference_forward(x, params, max_action)
    assert out_f32.shape == (batch, action_dim)
    assert jnp.allclose(out_f32, ref, atol=1e-5, rtol=1e-5), "f32 mismatch vs reference"

    # 2) Default fast path (bf16 activation DMA, f32 weights / accumulation).
    out = jax.block_until_ready(td3_actor_forward(x, params, max_action))
    ref_bf16 = reference_forward(
        x.astype(jnp.bfloat16).astype(jnp.float32), params, max_action)
    assert out.shape == (batch, action_dim)
    assert jnp.allclose(out, ref_bf16, atol=1e-2, rtol=1e-2), "bf16 mismatch vs reference"

    print("KERNEL_OK")
</pallas_src>

<mosaic_0001>
module attributes {stable_mosaic.version = 11 : i64} {
  func.func @td3_actor_kernel(%arg0: i32, %arg1: memref<2x16xf32, #tpu.memory_space<vmem>>, %arg2: memref<16x32xf32, #tpu.memory_space<vmem>>, %arg3: memref<1x32xf32, #tpu.memory_space<vmem>>, %arg4: memref<32x32xf32, #tpu.memory_space<vmem>>, %arg5: memref<1x32xf32, #tpu.memory_space<vmem>>, %arg6: memref<32x32xf32, #tpu.memory_space<vmem>>, %arg7: memref<1x32xf32, #tpu.memory_space<vmem>>, %arg8: memref<32x8xf32, #tpu.memory_space<vmem>>, %arg9: memref<1x8xf32, #tpu.memory_space<vmem>>, %arg10: memref<2x8xf32, #tpu.memory_space<vmem>>) attributes {dimension_semantics = [#tpu.dimension_semantics<parallel>], iteration_bounds = array<i64: 1>, scalar_prefetch = 0 : i64, scratch_operands = 0 : i64, tpu.core_type = #tpu.core_type<tc>, window_params = [{transform_indices = @transform_0, window_bounds = array<i64: 2, 16>}, {pipeline_mode = #tpu.pipeline_mode<synchronous>, transform_indices = @transform_1, window_bounds = array<i64: 16, 32>}, {pipeline_mode = #tpu.pipeline_mode<synchronous>, transform_indices = @transform_2, window_bounds = array<i64: 1, 32>}, {pipeline_mode = #tpu.pipeline_mode<synchronous>, transform_indices = @transform_3, window_bounds = array<i64: 32, 32>}, {pipeline_mode = #tpu.pipeline_mode<synchronous>, transform_indices = @transform_4, window_bounds = array<i64: 1, 32>}, {pipeline_mode = #tpu.pipeline_mode<synchronous>, transform_indices = @transform_5, window_bounds = array<i64: 32, 32>}, {pipeline_mode = #tpu.pipeline_mode<synchronous>, transform_indices = @transform_6, window_bounds = array<i64: 1, 32>}, {pipeline_mode = #tpu.pipeline_mode<synchronous>, transform_indices = @transform_7, window_bounds = array<i64: 32, 8>}, {pipeline_mode = #tpu.pipeline_mode<synchronous>, transform_indices = @transform_8, window_bounds = array<i64: 1, 8>}, {transform_indices = @transform_9, window_bounds = array<i64: 2, 8>}]} {
    %c0 = arith.constant 0 : index
    %c0_0 = arith.constant 0 : index
    %0 = vector.load %arg1[%c0, %c0_0] : memref<2x16xf32, #tpu.memory_space<vmem>>, vector<2x16xf32>
    %c0_1 = arith.constant 0 : index
    %c0_2 = arith.constant 0 : index
    %1 = vector.load %arg2[%c0_1, %c0_2] : memref<16x32xf32, #tpu.memory_space<vmem>>, vector<16x32xf32>
    %cst = arith.constant dense<0.000000e+00> : vector<2x32xf32>
    %2 = tpu.matmul %0, %1, %cst {dimension_numbers = #tpu.dot_dimension_numbers<[1], [0], [0], [1], [0, 0, 1, 1], [], []>} : vector<2x16xf32>, vector<16x32xf32>, vector<2x32xf32> -> vector<2x32xf32>
    %c0_3 = arith.constant 0 : index
    %c0_4 = arith.constant 0 : index
    %3 = vector.load %arg3[%c0_3, %c0_4] : memref<1x32xf32, #tpu.memory_space<vmem>>, vector<1x32xf32>
    %4 = vector.broadcast %3 : vector<1x32xf32> to vector<2x32xf32>
    %5 = arith.addf %2, %4 : vector<2x32xf32>
    %cst_5 = arith.constant 0.000000e+00 : f32
    %6 = vector.broadcast %cst_5 : f32 to vector<2x32xf32>
    %7 = arith.maximumf %5, %6 : vector<2x32xf32>
    %c0_6 = arith.constant 0 : index
    %c0_7 = arith.constant 0 : index
    %8 = vector.load %arg4[%c0_6, %c0_7] : memref<32x32xf32, #tpu.memory_space<vmem>>, vector<32x32xf32>
    %cst_8 = arith.constant dense<0.000000e+00> : vector<2x32xf32>
    %9 = tpu.matmul %7, %8, %cst_8 {dimension_numbers = #tpu.dot_dimension_numbers<[1], [0], [0], [1], [0, 0, 1, 1], [], []>} : vector<2x32xf32>, vector<32x32xf32>, vector<2x32xf32> -> vector<2x32xf32>
    %c0_9 = arith.constant 0 : index
    %c0_10 = arith.constant 0 : index
    %10 = vector.load %arg5[%c0_9, %c0_10] : memref<1x32xf32, #tpu.memory_space<vmem>>, vector<1x32xf32>
    %11 = vector.broadcast %10 : vector<1x32xf32> to vector<2x32xf32>
    %12 = arith.addf %9, %11 : vector<2x32xf32>
    %cst_11 = arith.constant 0.000000e+00 : f32
    %13 = vector.broadcast %cst_11 : f32 to vector<2x32xf32>
    %14 = arith.maximumf %12, %13 : vector<2x32xf32>
    %c0_12 = arith.constant 0 : index
    %c0_13 = arith.constant 0 : index
    %15 = vector.load %arg6[%c0_12, %c0_13] : memref<32x32xf32, #tpu.memory_space<vmem>>, vector<32x32xf32>
    %cst_14 = arith.constant dense<0.000000e+00> : vector<2x32xf32>
    %16 = tpu.matmul %14, %15, %cst_14 {dimension_numbers = #tpu.dot_dimension_numbers<[1], [0], [0], [1], [0, 0, 1, 1], [], []>} : vector<2x32xf32>, vector<32x32xf32>, vector<2x32xf32> -> vector<2x32xf32>
    %c0_15 = arith.constant 0 : index
    %c0_16 = arith.constant 0 : index
    %17 = vector.load %arg7[%c0_15, %c0_16] : memref<1x32xf32, #tpu.memory_space<vmem>>, vector<1x32xf32>
    %18 = vector.broadcast %17 : vector<1x32xf32> to vector<2x32xf32>
    %19 = arith.addf %16, %18 : vector<2x32xf32>
    %cst_17 = arith.constant 0.000000e+00 : f32
    %20 = vector.broadcast %cst_17 : f32 to vector<2x32xf32>
    %21 = arith.maximumf %19, %20 : vector<2x32xf32>
    %c0_18 = arith.constant 0 : index
    %c0_19 = arith.constant 0 : index
    %22 = vector.load %arg8[%c0_18, %c0_19] : memref<32x8xf32, #tpu.memory_space<vmem>>, vector<32x8xf32>
    %cst_20 = arith.constant dense<0.000000e+00> : vector<2x8xf32>
    %23 = tpu.matmul %21, %22, %cst_20 {dimension_numbers = #tpu.dot_dimension_numbers<[1], [0], [0], [1], [0, 0, 1, 1], [], []>} : vector<2x32xf32>, vector<32x8xf32>, vector<2x8xf32> -> vector<2x8xf32>
    %c0_21 = arith.constant 0 : index
    %c0_22 = arith.constant 0 : index
    %24 = vector.load %arg9[%c0_21, %c0_22] : memref<1x8xf32, #tpu.memory_space<vmem>>, vector<1x8xf32>
    %25 = vector.broadcast %24 : vector<1x8xf32> to vector<2x8xf32>
    %26 = arith.addf %23, %25 : vector<2x8xf32>
    %27 = math.tanh %26 : vector<2x8xf32>
    %cst_23 = arith.constant 1.000000e+00 : f32
    %28 = vector.broadcast %cst_23 : f32 to vector<2x8xf32>
    %29 = arith.addf %27, %28 : vector<2x8xf32>
    %cst_24 = arith.constant 5.000000e-01 : f32
    %30 = vector.broadcast %cst_24 : f32 to vector<2x8xf32>
    %31 = arith.mulf %29, %30 : vector<2x8xf32>
    %c0_25 = arith.constant 0 : index
    %c0_26 = arith.constant 0 : index
    %32 = vector.load %arg10[%c0_25, %c0_26] : memref<2x8xf32, #tpu.memory_space<vmem>>, vector<2x8xf32>
    tpu.vector_store %arg10[%c0_25, %c0_26], %31 {strides = array<i32>} : memref<2x8xf32, #tpu.memory_space<vmem>>, vector<2x8xf32>,
    return
  }
  func.func @transform_0(%arg0: i32) -> (i32, i32) {
    %c0_i32 = arith.constant 0 : i32
    %c0_i32_0 = arith.constant 0 : i32
    return %arg0, %c0_i32 : i32, i32
  }
  func.func @transform_1(%arg0: i32) -> (i32, i32) {
    %c0_i32 = arith.constant 0 : i32
    %c0_i32_0 = arith.constant 0 : i32
    %c0_i32_1 = arith.constant 0 : i32
    return %c0_i32, %c0_i32_0 : i32, i32
  }
  func.func @transform_2(%arg0: i32) -> (i32, i32) {
    %c0_i32 = arith.constant 0 : i32
    %c0_i32_0 = arith.constant 0 : i32
    %c0_i32_1 = arith.constant 0 : i32
    return %c0_i32, %c0_i32_0 : i32, i32
  }
  func.func @transform_3(%arg0: i32) -> (i32, i32) {
    %c0_i32 = arith.constant 0 : i32
    %c0_i32_0 = arith.constant 0 : i32
    %c0_i32_1 = arith.constant 0 : i32
    return %c0_i32, %c0_i32_0 : i32, i32
  }
  func.func @transform_4(%arg0: i32) -> (i32, i32) {
    %c0_i32 = arith.constant 0 : i32
    %c0_i32_0 = arith.constant 0 : i32
    %c0_i32_1 = arith.constant 0 : i32
    return %c0_i32, %c0_i32_0 : i32, i32
  }
  func.func @transform_5(%arg0: i32) -> (i32, i32) {
    %c0_i32 = arith.constant 0 : i32
    %c0_i32_0 = arith.constant 0 : i32
    %c0_i32_1 = arith.constant 0 : i32
    return %c0_i32, %c0_i32_0 : i32, i32
  }
  func.func @transform_6(%arg0: i32) -> (i32, i32) {
    %c0_i32 = arith.constant 0 : i32
    %c0_i32_0 = arith.constant 0 : i32
    %c0_i32_1 = arith.constant 0 : i32
    return %c0_i32, %c0_i32_0 : i32, i32
  }
  func.func @transform_7(%arg0: i32) -> (i32, i32) {
    %c0_i32 = arith.constant 0 : i32
    %c0_i32_0 = arith.constant 0 : i32
    %c0_i32_1 = arith.constant 0 : i32
    return %c0_i32, %c0_i32_0 : i32, i32
  }
  func.func @transform_8(%arg0: i32) -> (i32, i32) {
    %c0_i32 = arith.constant 0 : i32
    %c0_i32_0 = arith.constant 0 : i32
    %c0_i32_1 = arith.constant 0 : i32
    return %c0_i32, %c0_i32_0 : i32, i32
  }
  func.func @transform_9(%arg0: i32) -> (i32, i32) {
    %c0_i32 = arith.constant 0 : i32
    %c0_i32_0 = arith.constant 0 : i32
    return %arg0, %c0_i32 : i32, i32
  }
}

</mosaic_0001>

<llo_original>
// kernel: tpu_custom_call.1
$region0: #{tpu_custom_call.1}
  #allocation0 [shape = 'u32[]', space=smem, size = 0x4, offset = 0x4, fixed_abs, tag = 'smem constant byte address 0x4 - core index']
  #allocation1 [shape = 'u32[144,128]{1,0:T(1,128)}', space=vmem, size = 0x12000, scoped, tag = 'internal scratch']
  %s0 = inlined_call_operand.vmem [shape: f32[2,16], index: 0, kind: input, shape index: {}]
  %s1 = inlined_call_operand.vmem [shape: f32[16,32], index: 1, kind: input, shape index: {}]
  %s2 = inlined_call_operand.hbm [shape: f32[1,32], index: 2, kind: input, shape index: {}]
  %s3 = inlined_call_operand.vmem [shape: f32[32,32], index: 3, kind: input, shape index: {}]
  %s4 = inlined_call_operand.hbm [shape: f32[1,32], index: 4, kind: input, shape index: {}]
  %s5 = inlined_call_operand.hbm [shape: f32[32,32], index: 5, kind: input, shape index: {}]
  %s6 = inlined_call_operand.vmem [shape: f32[1,32], index: 6, kind: input, shape index: {}]
  %s7 = inlined_call_operand.vmem [shape: f32[32,8], index: 7, kind: input, shape index: {}]
  %s8 = inlined_call_operand.vmem [shape: f32[1,8], index: 8, kind: input, shape index: {}]
  %s9 = inlined_call_operand.hbm [shape: f32[2,8], index: 9, kind: output, shape index: {}]
  %s10 = sld [smem:[#allocation0]]
  $region58: #{tpu_custom_call.1} parent=0
    _
  %s12 = ssub.s32 1, %s10
  %s13 = scalar_select 0, %s12, %s10
  $region1: #{tpu_custom_call.1} parent=0
    #allocation2 [shape = 'u8[512]{0}', space=vmem, size = 0x400, scoped, tag = 'input window, operand 2, single buffered']
    #allocation3 [shape = 's32[1]{0}', space=sflag, size = 0x4, scoped, tag = 'scoped memory for tpu_custom_call.1']
    #allocation4 [shape = 's32[1]{0}', space=sflag, size = 0x4, scoped, tag = 'scoped memory for tpu_custom_call.1']
    #allocation5 [shape = 'u8[512]{0}', space=vmem, size = 0x400, scoped, tag = 'input window, operand 4, single buffered']
    #allocation6 [shape = 's32[1]{0}', space=sflag, size = 0x4, scoped, tag = 'scoped memory for tpu_custom_call.1']
    #allocation7 [shape = 'u8[16384]{0}', space=vmem, size = 0x4000, scoped, tag = 'input window, operand 5, single buffered']
    #allocation8 [shape = 'u8[1024]{0}', space=vmem, size = 0x400, scoped, tag = 'output window, operand 0, single buffered']
    %14 = vsyncpa [#allocation3], 0
    %15 = vsyncpa [#allocation6], 0
    %16 = vsyncpa [#allocation4], 0
    // Predicated region
    $region2: #{tpu_custom_call.1} parent=1 // pred_check
      _
    $region3: #{tpu_custom_call.1} parent=1 // pred_check_branch
      %18 = sbr.rel (0) target = $region5
    $region4: #{tpu_custom_call.1} parent=1 // pred_region
      _
    $region5: #{tpu_custom_call.1} parent=1 // pred_fallthru
      _
    // Predicated region
    $region6: #{tpu_custom_call.1} parent=1 // pred_check
      _
    $region7: #{tpu_custom_call.1} parent=1 // pred_check_branch
      %20 = sbr.rel (0) target = $region9
    $region8: #{tpu_custom_call.1} parent=1 // pred_region
      _
    $region9: #{tpu_custom_call.1} parent=1 // pred_fallthru
      _
    // Predicated region
    $region10: #{tpu_custom_call.1} parent=1 // pred_check
      _
    $region11: #{tpu_custom_call.1} parent=1 // pred_check_branch
      %22 = sbr.rel (0) target = $region13
    $region12: #{tpu_custom_call.1} parent=1 // pred_region
      %s24 = ssub.s32 16, 16
      %25 = vsyncadd [#allocation3], %s24
      %s27 = sshll.u32 [#allocation2], 4
      %s28 = int_to_ptr.vmem [resolvable:$true] %s27
      %30 = dma.hbm_to_vmem [thread:$0]  %s2, 16, %s28, [#allocation3]
    $region13: #{tpu_custom_call.1} parent=1 // pred_fallthru
      _
    // Predicated region
    $region14: #{tpu_custom_call.1} parent=1 // pred_check
      _
    $region15: #{tpu_custom_call.1} parent=1 // pred_check_branch
      %32 = sbr.rel (0) target = $region17
    $region16: #{tpu_custom_call.1} parent=1 // pred_region
      _
    $region17: #{tpu_custom_call.1} parent=1 // pred_fallthru
      _
    // Predicated region
    $region18: #{tpu_custom_call.1} parent=1 // pred_check
      _
    $region19: #{tpu_custom_call.1} parent=1 // pred_check_branch
      %34 = sbr.rel (0) target = $region21
    $region20: #{tpu_custom_call.1} parent=1 // pred_region
      %s36 = ssub.s32 16, 16
      %37 = vsyncadd [#allocation6], %s36
      %s39 = sshll.u32 [#allocation5], 4
      %s40 = int_to_ptr.vmem [resolvable:$true] %s39
      %42 = dma.hbm_to_vmem [thread:$0]  %s4, 16, %s40, [#allocation6]
    $region21: #{tpu_custom_call.1} parent=1 // pred_fallthru
      _
    // Predicated region
    $region22: #{tpu_custom_call.1} parent=1 // pred_check
      _
    $region23: #{tpu_custom_call.1} parent=1 // pred_check_branch
      %44 = sbr.rel (0) target = $region25
    $region24: #{tpu_custom_call.1} parent=1 // pred_region
      %s46 = ssub.s32 512, 512
      %47 = vsyncadd [#allocation6], %s46
      %s48 = sshll.u32 [#allocation7], 4
      %s49 = int_to_ptr.vmem [resolvable:$true] %s48
      %54 = dma.hbm_to_vmem [thread:$0]  %s5, 512, %s49, [#allocation6], 128, 128, 8
    $region25: #{tpu_custom_call.1} parent=1 // pred_fallthru
      _
    // Predicated region
    $region26: #{tpu_custom_call.1} parent=1 // pred_check
      _
    $region27: #{tpu_custom_call.1} parent=1 // pred_check_branch
      %56 = sbr.rel (0) target = $region29
    $region28: #{tpu_custom_call.1} parent=1 // pred_region
      _
    $region29: #{tpu_custom_call.1} parent=1 // pred_fallthru
      _
    // Predicated region
    $region30: #{tpu_custom_call.1} parent=1 // pred_check
      _
    $region31: #{tpu_custom_call.1} parent=1 // pred_check_branch
      %58 = sbr.rel (0) target = $region33
    $region32: #{tpu_custom_call.1} parent=1 // pred_region
      _
    $region33: #{tpu_custom_call.1} parent=1 // pred_fallthru
      _
    // Predicated region
    $region34: #{tpu_custom_call.1} parent=1 // pred_check
      _
    $region35: #{tpu_custom_call.1} parent=1 // pred_check_branch
      %60 = sbr.rel (0) target = $region37
    $region36: #{tpu_custom_call.1} parent=1 // pred_region
      _
    $region37: #{tpu_custom_call.1} parent=1 // pred_fallthru
      _
    // Predicated region
    $region38: #{tpu_custom_call.1} parent=1 // pred_check
      _
    $region39: #{tpu_custom_call.1} parent=1 // pred_check_branch
      %62 = sbr.rel (0) target = $region41
    $region40: #{tpu_custom_call.1} parent=1 // pred_region
      %63 = dma.done [#allocation3], 16
    $region41: #{tpu_custom_call.1} parent=1 // pred_fallthru
      _
    // Predicated region
    $region42: #{tpu_custom_call.1} parent=1 // pred_check
      _
    $region43: #{tpu_custom_call.1} parent=1 // pred_check_branch
      %65 = sbr.rel (0) target = $region45
    $region44: #{tpu_custom_call.1} parent=1 // pred_region
      %66 = dma.done [#allocation6], 16
    $region45: #{tpu_custom_call.1} parent=1 // pred_fallthru
      _
    // Predicated region
    $region46: #{tpu_custom_call.1} parent=1 // pred_check
      _
    $region47: #{tpu_custom_call.1} parent=1 // pred_check_branch
      %68 = sbr.rel (0) target = $region49
    $region48: #{tpu_custom_call.1} parent=1 // pred_region
      %69 = dma.done [#allocation6], 512
    $region49: #{tpu_custom_call.1} parent=1 // pred_fallthru
      _
    %v70 = vld [vmem:[%s0] sm:$0x3]
    %v71 = vld [vmem:[%s1] sm:$0xff]
    %v72 = vld [vmem:[%s1 + $0x8] sm:$0xff]
    %v73 = vld [vmem:[#allocation2] sm:$0x1]
    %v75 = vlaneseq
    %v76 = vshrl.u32 %v75, 7
    %v77 = vsub.s32 0, %v76
    %v78 = vrot.slane %v73, %v77
    %vm80 = vcmask 130048
    %v82 = vsel %vm80, %v70, 0
    %84 = vmatprep.subr.mxu0 0.0
    %85 = vmatpush1.msra.mxu0 %v71
    %86 = vmatprep.subr.mxu0 0.0
    %87 = vmatpush1.msra.mxu0 %v72
    %88 = vmatprep.subr.mxu0 0.0
    %89 = vmatpush1.msra.mxu0 0.0
    %90 = vmatprep.subr.mxu0 0.0
    %91 = vmatpush1.msra.mxu0 0.0
    %92 = vmatprep.subr.mxu0 0.0
    %93 = vmatpush1.msra.mxu0 0.0
    %94 = vmatprep.subr.mxu0 0.0
    %95 = vmatpush1.msra.mxu0 0.0
    %96 = vmatprep.subr.mxu0 0.0
    %97 = vmatpush1.msra.mxu0 0.0
    %98 = vmatprep.subr.mxu0 0.0
    %99 = vmatpush1.msra.mxu0 0.0
    %100 = vmatprep.subr.mxu0 0.0
    %101 = vmatpush1.msra.mxu0 0.0
    %102 = vmatprep.subr.mxu0 0.0
    %103 = vmatpush1.msra.mxu0 0.0
    %104 = vmatprep.subr.mxu0 0.0
    %105 = vmatpush1.msra.mxu0 0.0
    %106 = vmatprep.subr.mxu0 0.0
    %107 = vmatpush1.msra.mxu0 0.0
    %108 = vmatprep.subr.mxu0 0.0
    %109 = vmatpush1.msra.mxu0 0.0
    %110 = vmatprep.subr.mxu0 0.0
    %111 = vmatpush1.msra.mxu0 0.0
    %112 = vmatprep.subr.mxu0 0.0
    %113 = vmatpush1.msra.mxu0 0.0
    %114 = vmatprep.subr.mxu0 0.0
    %115 = vmatpush1.msra.mxu0 0.0
    %116 = vmatprep.subr.mxu0 0.0
    %117 = vmatpush1.msra.mxu0 0.0
    %118 = vmatprep.subr.mxu0 0.0
    %119 = vmatpush1.msra.mxu0 0.0
    %120 = vmatprep.subr.mxu0 0.0
    %121 = vmatpush1.msra.mxu0 0.0
    %122 = vmatprep.subr.mxu0 0.0
    %123 = vmatpush1.msra.mxu0 0.0
    %124 = vmatprep.subr.mxu0 0.0
    %125 = vmatpush1.msra.mxu0 0.0
    %126 = vmatprep.subr.mxu0 0.0
    %127 = vmatpush1.msra.mxu0 0.0
    %128 = vmatprep.subr.mxu0 0.0
    %129 = vmatpush1.msra.mxu0 0.0
    %130 = vmatprep.subr.mxu0 0.0
    %131 = vmatpush1.msra.mxu0 0.0
    %132 = vmatprep.subr.mxu0 0.0
    %133 = vmatpush1.msra.mxu0 0.0
    %134 = vmatprep.subr.mxu0 0.0
    %135 = vmatpush1.msra.mxu0 0.0
    %136 = vmatprep.subr.mxu0 0.0
    %137 = vmatpush1.msra.mxu0 0.0
    %138 = vmatprep.subr.mxu0 0.0
    %139 = vmatpush1.msra.mxu0 0.0
    %140 = vmatprep.subr.mxu0 0.0
    %141 = vmatpush1.msra.mxu0 0.0
    %142 = vmatprep.subr.mxu0 0.0
    %143 = vmatpush1.msra.mxu0 0.0
    %144 = vmatprep.subr.mxu0 0.0
    %145 = vmatpush1.msra.mxu0 0.0
    %146 = vmatprep.subr.mxu0 0.0
    %147 = vmatpush1.msra.mxu0 0.0
    %148 = vmatprep.mubr.f32.mxu0 0.0
    %149 = vmatmul.mubr.f32.gmra.mrb[0].mxu0 %v82
    %v150 = vpop.f32.mrb[0].mxu0
    %v151 = vadd.f32 %v78, %v150
    %v152 = vpop.f32.mrb[0].mxu0
    %153 = vdwg.mxu0
    %v154 = vmax.f32 %v151, 0.0
    %v155 = vld [vmem:[%s3] sm:$0xff]
    %v156 = vld [vmem:[%s3 + $0x8] sm:$0xff]
    %v157 = vld [vmem:[%s3 + $0x10] sm:$0xff]
    %v158 = vld [vmem:[%s3 + $0x18] sm:$0xff]
    %v159 = vld [vmem:[#allocation5] sm:$0x1]
    %v161 = vlaneseq
    %v162 = vshrl.u32 %v161, 7
    %v163 = vsub.s32 0, %v162
    %v164 = vrot.slane %v159, %v163
    %vm166 = vcmask 261120
    %v168 = vsel %vm166, %v154, 0
    %170 = vmatprep.subr.mxu0 0.0
    %171 = vmatpush1.msra.mxu0 %v155
    %172 = vmatprep.subr.mxu0 0.0
    %173 = vmatpush1.msra.mxu0 %v156
    %174 = vmatprep.subr.mxu0 0.0
    %175 = vmatpush1.msra.mxu0 %v157
    %176 = vmatprep.subr.mxu0 0.0
    %177 = vmatpush1.msra.mxu0 %v158
    %178 = vmatprep.subr.mxu0 0.0
    %179 = vmatpush1.msra.mxu0 0.0
    %180 = vmatprep.subr.mxu0 0.0
    %181 = vmatpush1.msra.mxu0 0.0
    %182 = vmatprep.subr.mxu0 0.0
    %183 = vmatpush1.msra.mxu0 0.0
    %184 = vmatprep.subr.mxu0 0.0
    %185 = vmatpush1.msra.mxu0 0.0
    %186 = vmatprep.subr.mxu0 0.0
    %187 = vmatpush1.msra.mxu0 0.0
    %188 = vmatprep.subr.mxu0 0.0
    %189 = vmatpush1.msra.mxu0 0.0
    %190 = vmatprep.subr.mxu0 0.0
    %191 = vmatpush1.msra.mxu0 0.0
    %192 = vmatprep.subr.mxu0 0.0
    %193 = vmatpush1.msra.mxu0 0.0
    %194 = vmatprep.subr.mxu0 0.0
    %195 = vmatpush1.msra.mxu0 0.0
    %196 = vmatprep.subr.mxu0 0.0
    %197 = vmatpush1.msra.mxu0 0.0
    %198 = vmatprep.subr.mxu0 0.0
    %199 = vmatpush1.msra.mxu0 0.0
    %200 = vmatprep.subr.mxu0 0.0
    %201 = vmatpush1.msra.mxu0 0.0
    %202 = vmatprep.subr.mxu0 0.0
    %203 = vmatpush1.msra.mxu0 0.0
    %204 = vmatprep.subr.mxu0 0.0
    %205 = vmatpush1.msra.mxu0 0.0
    %206 = vmatprep.subr.mxu0 0.0
    %207 = vmatpush1.msra.mxu0 0.0
    %208 = vmatprep.subr.mxu0 0.0
    %209 = vmatpush1.msra.mxu0 0.0
    %210 = vmatprep.subr.mxu0 0.0
    %211 = vmatpush1.msra.mxu0 0.0
    %212 = vmatprep.subr.mxu0 0.0
    %213 = vmatpush1.msra.mxu0 0.0
    %214 = vmatprep.subr.mxu0 0.0
    %215 = vmatpush1.msra.mxu0 0.0
    %216 = vmatprep.subr.mxu0 0.0
    %217 = vmatpush1.msra.mxu0 0.0
    %218 = vmatprep.subr.mxu0 0.0
    %219 = vmatpush1.msra.mxu0 0.0
    %220 = vmatprep.subr.mxu0 0.0
    %221 = vmatpush1.msra.mxu0 0.0
    %222 = vmatprep.subr.mxu0 0.0
    %223 = vmatpush1.msra.mxu0 0.0
    %224 = vmatprep.subr.mxu0 0.0
    %225 = vmatpush1.msra.mxu0 0.0
    %226 = vmatprep.subr.mxu0 0.0
    %227 = vmatpush1.msra.mxu0 0.0
    %228 = vmatprep.subr.mxu0 0.0
    %229 = vmatpush1.msra.mxu0 0.0
    %230 = vmatprep.subr.mxu0 0.0
    %231 = vmatpush1.msra.mxu0 0.0
    %232 = vmatprep.subr.mxu0 0.0
    %233 = vmatpush1.msra.mxu0 0.0
    %234 = vmatprep.mubr.f32.mxu0 0.0
    %235 = vmatmul.mubr.f32.gmra.mrb[0].mxu0 %v168
    %v236 = vpop.f32.mrb[0].mxu0
    %v237 = vadd.f32 %v164, %v236
    %v238 = vpop.f32.mrb[0].mxu0
    %239 = vdwg.mxu0
    %v240 = vmax.f32 %v237, 0.0
    %v241 = vld [vmem:[#allocation7] sm:$0xff]
    %v242 = vld [vmem:[#allocation7 + $0x8] sm:$0xff]
    %v243 = vld [vmem:[#allocation7 + $0x10] sm:$0xff]
    %v244 = vld [vmem:[#allocation7 + $0x18] sm:$0xff]
    %v245 = vld [vmem:[%s6] sm:$0x1]
    %v247 = vlaneseq
    %v248 = vshrl.u32 %v247, 7
    %v249 = vsub.s32 0, %v248
    %v250 = vrot.slane %v245, %v249
    %v253 = vsel %vm166, %v240, 0
    %255 = vmatprep.subr.mxu0 0.0
    %256 = vmatpush1.msra.mxu0 %v241
    %257 = vmatprep.subr.mxu0 0.0
    %258 = vmatpush1.msra.mxu0 %v242
    %259 = vmatprep.subr.mxu0 0.0
    %260 = vmatpush1.msra.mxu0 %v243
    %261 = vmatprep.subr.mxu0 0.0
    %262 = vmatpush1.msra.mxu0 %v244
    %263 = vmatprep.subr.mxu0 0.0
    %264 = vmatpush1.msra.mxu0 0.0
    %265 = vmatprep.subr.mxu0 0.0
    %266 = vmatpush1.msra.mxu0 0.0
    %267 = vmatprep.subr.mxu0 0.0
    %268 = vmatpush1.msra.mxu0 0.0
    %269 = vmatprep.subr.mxu0 0.0
    %270 = vmatpush1.msra.mxu0 0.0
    %271 = vmatprep.subr.mxu0 0.0
    %272 = vmatpush1.msra.mxu0 0.0
    %273 = vmatprep.subr.mxu0 0.0
    %274 = vmatpush1.msra.mxu0 0.0
    %275 = vmatprep.subr.mxu0 0.0
    %276 = vmatpush1.msra.mxu0 0.0
    %277 = vmatprep.subr.mxu0 0.0
    %278 = vmatpush1.msra.mxu0 0.0
    %279 = vmatprep.subr.mxu0 0.0
    %280 = vmatpush1.msra.mxu0 0.0
    %281 = vmatprep.subr.mxu0 0.0
    %282 = vmatpush1.msra.mxu0 0.0
    %283 = vmatprep.subr.mxu0 0.0
    %284 = vmatpush1.msra.mxu0 0.0
    %285 = vmatprep.subr.mxu0 0.0
    %286 = vmatpush1.msra.mxu0 0.0
    %287 = vmatprep.subr.mxu0 0.0
    %288 = vmatpush1.msra.mxu0 0.0
    %289 = vmatprep.subr.mxu0 0.0
    %290 = vmatpush1.msra.mxu0 0.0
    %291 = vmatprep.subr.mxu0 0.0
    %292 = vmatpush1.msra.mxu0 0.0
    %293 = vmatprep.subr.mxu0 0.0
    %294 = vmatpush1.msra.mxu0 0.0
    %295 = vmatprep.subr.mxu0 0.0
    %296 = vmatpush1.msra.mxu0 0.0
    %297 = vmatprep.subr.mxu0 0.0
    %298 = vmatpush1.msra.mxu0 0.0
    %299 = vmatprep.subr.mxu0 0.0
    %300 = vmatpush1.msra.mxu0 0.0
    %301 = vmatprep.subr.mxu0 0.0
    %302 = vmatpush1.msra.mxu0 0.0
    %303 = vmatprep.subr.mxu0 0.0
    %304 = vmatpush1.msra.mxu0 0.0
    %305 = vmatprep.subr.mxu0 0.0
    %306 = vmatpush1.msra.mxu0 0.0
    %307 = vmatprep.subr.mxu0 0.0
    %308 = vmatpush1.msra.mxu0 0.0
    %309 = vmatprep.subr.mxu0 0.0
    %310 = vmatpush1.msra.mxu0 0.0
    %311 = vmatprep.subr.mxu0 0.0
    %312 = vmatpush1.msra.mxu0 0.0
    %313 = vmatprep.subr.mxu0 0.0
    %314 = vmatpush1.msra.mxu0 0.0
    %315 = vmatprep.subr.mxu0 0.0
    %316 = vmatpush1.msra.mxu0 0.0
    %317 = vmatprep.subr.mxu0 0.0
    %318 = vmatpush1.msra.mxu0 0.0
    %319 = vmatprep.mubr.f32.mxu0 0.0
    %320 = vmatmul.mubr.f32.gmra.mrb[0].mxu0 %v253
    %v321 = vpop.f32.mrb[0].mxu0
    %v322 = vadd.f32 %v250, %v321
    %v323 = vpop.f32.mrb[0].mxu0
    %324 = vdwg.mxu0
    %v325 = vmax.f32 %v322, 0.0
    %v326 = vld [vmem:[%s7] sm:$0xff]
    %v327 = vld [vmem:[%s7 + $0x8] sm:$0xff]
    %v328 = vld [vmem:[%s7 + $0x10] sm:$0xff]
    %v329 = vld [vmem:[%s7 + $0x18] sm:$0xff]
    %v330 = vld [vmem:[%s8] sm:$0x1]
    %v332 = vlaneseq
    %v333 = vshrl.u32 %v332, 7
    %v334 = vsub.s32 0, %v333
    %v335 = vrot.slane %v330, %v334
    %v338 = vsel %vm166, %v325, 0
    %340 = vmatprep.subr.mxu0 0.0
    %341 = vmatpush1.msra.mxu0 %v326
    %342 = vmatprep.subr.mxu0 0.0
    %343 = vmatpush1.msra.mxu0 %v327
    %344 = vmatprep.subr.mxu0 0.0
    %345 = vmatpush1.msra.mxu0 %v328
    %346 = vmatprep.subr.mxu0 0.0
    %347 = vmatpush1.msra.mxu0 %v329
    %348 = vmatprep.subr.mxu0 0.0
    %349 = vmatpush1.msra.mxu0 0.0
    %350 = vmatprep.subr.mxu0 0.0
    %351 = vmatpush1.msra.mxu0 0.0
    %352 = vmatprep.subr.mxu0 0.0
    %353 = vmatpush1.msra.mxu0 0.0
    %354 = vmatprep.subr.mxu0 0.0
    %355 = vmatpush1.msra.mxu0 0.0
    %356 = vmatprep.subr.mxu0 0.0
    %357 = vmatpush1.msra.mxu0 0.0
    %358 = vmatprep.subr.mxu0 0.0
    %359 = vmatpush1.msra.mxu0 0.0
    %360 = vmatprep.subr.mxu0 0.0
    %361 = vmatpush1.msra.mxu0 0.0
    %362 = vmatprep.subr.mxu0 0.0
    %363 = vmatpush1.msra.mxu0 0.0
    %364 = vmatprep.subr.mxu0 0.0
    %365 = vmatpush1.msra.mxu0 0.0
    %366 = vmatprep.subr.mxu0 0.0
    %367 = vmatpush1.msra.mxu0 0.0
    %368 = vmatprep.subr.mxu0 0.0
    %369 = vmatpush1.msra.mxu0 0.0
    %370 = vmatprep.subr.mxu0 0.0
    %371 = vmatpush1.msra.mxu0 0.0
    %372 = vmatprep.subr.mxu0 0.0
    %373 = vmatpush1.msra.mxu0 0.0
    %374 = vmatprep.subr.mxu0 0.0
    %375 = vmatpush1.msra.mxu0 0.0
    %376 = vmatprep.subr.mxu0 0.0
    %377 = vmatpush1.msra.mxu0 0.0
    %378 = vmatprep.subr.mxu0 0.0
    %379 = vmatpush1.msra.mxu0 0.0
    %380 = vmatprep.subr.mxu0 0.0
    %381 = vmatpush1.msra.mxu0 0.0
    %382 = vmatprep.subr.mxu0 0.0
    %383 = vmatpush1.msra.mxu0 0.0
    %384 = vmatprep.subr.mxu0 0.0
    %385 = vmatpush1.msra.mxu0 0.0
    %386 = vmatprep.subr.mxu0 0.0
    %387 = vmatpush1.msra.mxu0 0.0
    %388 = vmatprep.subr.mxu0 0.0
    %389 = vmatpush1.msra.mxu0 0.0
    %390 = vmatprep.subr.mxu0 0.0
    %391 = vmatpush1.msra.mxu0 0.0
    %392 = vmatprep.subr.mxu0 0.0
    %393 = vmatpush1.msra.mxu0 0.0
    %394 = vmatprep.subr.mxu0 0.0
    %395 = vmatpush1.msra.mxu0 0.0
    %396 = vmatprep.subr.mxu0 0.0
    %397 = vmatpush1.msra.mxu0 0.0
    %398 = vmatprep.subr.mxu0 0.0
    %399 = vmatpush1.msra.mxu0 0.0
    %400 = vmatprep.subr.mxu0 0.0
    %401 = vmatpush1.msra.mxu0 0.0
    %402 = vmatprep.subr.mxu0 0.0
    %403 = vmatpush1.msra.mxu0 0.0
    %404 = vmatprep.mubr.f32.mxu0 0.0
    %405 = vmatmul.mubr.f32.gmra.mrb[0].mxu0 %v338
    %v406 = vpop.f32.mrb[0].mxu0
    %v407 = vadd.f32 %v335, %v406
    %v408 = vpop.f32.mrb[0].mxu0
    %409 = vdwg.mxu0
    %v410 = vtanh.pop %v407
    %v411 = vadd.f32 %v410, 1.0
    %v412 = vmul.f32 %v411, 0.5
    %vm413 = vcmask 58368
    %414 = vst.msk [vmem:[#allocation8] sm:$0x3] %vm413, %v412
    // Predicated region
    $region50: #{tpu_custom_call.1} parent=1 // pred_check
      _
    $region51: #{tpu_custom_call.1} parent=1 // pred_check_branch
      %416 = sbr.rel (0) target = $region53
    $region52: #{tpu_custom_call.1} parent=1 // pred_region
      %s418 = ssub.s32 32, 32
      %419 = vsyncadd [#allocation4], %s418
      %s421 = sshll.u32 [#allocation8], 4
      %s422 = int_to_ptr.vmem [resolvable:$true] %s421
      %424 = dma.vmem_to_hbm [thread:$0]  %s422, 32, %s9, [#allocation4]
    $region53: #{tpu_custom_call.1} parent=1 // pred_fallthru
      _
    // Predicated region
    $region54: #{tpu_custom_call.1} parent=1 // pred_check
      _
    $region55: #{tpu_custom_call.1} parent=1 // pred_check_branch
      %426 = sbr.rel (0) target = $region57
    $region56: #{tpu_custom_call.1} parent=1 // pred_region
      %427 = dma.done [#allocation4], 32
    $region57: #{tpu_custom_call.1} parent=1 // pred_fallthru
      _
    %428 = vsyncpa [#allocation3], 1
    %429 = vsyncpa [#allocation6], 1
    %430 = vsyncpa [#allocation4], 1

</llo_original>
